<compile_context>
chip_gen: v5e
topology: v5e:2x2
jax: 0.10.0
libtpu: 0.0.40
codegen_flags: <defaults>
</compile_context>

<pallas_src>
import jax
import jax.numpy as jnp
from jax.experimental import pallas as pl
from jax.experimental.pallas import tpu as pltpu


_LANE = 128
_M_TILE_CAP = 512          # max rows per M block (fits VMEM even at K=4096 f32)
_K_RESIDENT_MAX = 4096     # above this, K gets a reduction grid axis
_K_TILE = 1024             # target K tile when the reduction axis is used


def _round_up(x, m):
    return ((x + m - 1) // m) * m


# ---------------------------------------------------------------------------
# Kernels
# ---------------------------------------------------------------------------
def _linear_kernel(x_ref, w_ref, o_ref):
    # Full K resident: a single dot per output tile, no accumulator needed.
    # x_ref: (tm, K) input dtype, w_ref: (K, tn) bf16  ->  o_ref: (tm, tn)
    o_ref[...] = jnp.dot(
        x_ref[...].astype(jnp.bfloat16),
        w_ref[...],
        preferred_element_type=jnp.float32,
    ).astype(o_ref.dtype)


def _linear_kernel_acc(x_ref, w_ref, o_ref, acc_ref):
    # K tiled: accumulate partial products in an f32 VMEM scratch.
    k = pl.program_id(2)

    @pl.when(k == 0)
    def _():
        acc_ref[...] = jnp.zeros_like(acc_ref)

    acc_ref[...] += jnp.dot(
        x_ref[...].astype(jnp.bfloat16),
        w_ref[...],
        preferred_element_type=jnp.float32,
    )

    @pl.when(k == pl.num_programs(2) - 1)
    def _():
        o_ref[...] = acc_ref[...].astype(o_ref.dtype)


# ---------------------------------------------------------------------------
# One-time weight preparation (done once at parameter load, not per forward).
# ---------------------------------------------------------------------------
def prepare_weight(w):
    """PyTorch-layout (O, K) weight -> bf16 (Kp, Np) MXU-RHS layout + config."""
    O, K = w.shape
    Np = _round_up(O, _LANE)
    # 128-multiple N tile that divides Np exactly (no wasted columns); prefer
    # 128 for small O (also gives >=2 N programs at O=256 for v7x megacore).
    tn = 128 if Np <= 256 else (256 if Np % 256 == 0 else 128)

    if K <= _K_RESIDENT_MAX:
        # Single K block: block dim == full array dim, exempt from the
        # 128-divisibility rule -> no K padding at all.
        tk, Kp = K, K
    else:
        gk = pl.cdiv(K, _K_TILE)
        tk = _round_up(pl.cdiv(K, gk), _LANE)
        Kp = gk * tk

    wp = jnp.transpose(w).astype(jnp.bfloat16)          # (K, O)
    if (Kp, Np) != wp.shape:
        wp = jnp.pad(wp, ((0, Kp - K), (0, Np - O)))
    cfg = dict(out_features=O, in_features=K, tn=tn, tk=tk)
    return wp, cfg


# ---------------------------------------------------------------------------
# Forward
# ---------------------------------------------------------------------------
def classifier_forward(x, wp, cfg):
    """x: (B, C, H, W) or (B, K); wp/cfg from prepare_weight. Returns (B, O)."""
    B = x.shape[0]
    x2 = x.reshape(B, -1)                        # torch: x.view(B, -1)
    K, O = cfg["in_features"], cfg["out_features"]
    assert x2.shape[1] == K, "weight in_features must equal C*H*W"

    Kp, Np = wp.shape
    tk, tn = cfg["tk"], cfg["tn"]
    gk, gn = Kp // tk, Np // tn

    # M tile: smallest sublane-aligned tile such that gm blocks hug B.
    sub = 16 if x2.dtype == jnp.bfloat16 else 8
    gm = pl.cdiv(B, _M_TILE_CAP)
    tm = _round_up(pl.cdiv(B, gm), sub)
    Mp = gm * tm

    # Pad only the (small) activation operand; the weight was padded once.
    if (Mp, Kp) != x2.shape:
        x2 = jnp.pad(x2, ((0, Mp - B), (0, Kp - K)))

    out_dtype = x.dtype
    x_bytes = tm * tk * x2.dtype.itemsize
    w_bytes = tk * tn * wp.dtype.itemsize
    o_bytes = tm * tn * jnp.dtype(out_dtype).itemsize
    acc_bytes = tm * tn * 4 if gk > 1 else 0
    vmem_need = 2 * (x_bytes + w_bytes + o_bytes) + acc_bytes + (2 << 20)
    vmem_limit = int(min(max(vmem_need, 4 << 20), 64 << 20))

    cost = pl.CostEstimate(
        flops=2 * Mp * Kp * Np,
        transcendentals=0,
        bytes_accessed=(Mp * Kp * x2.dtype.itemsize
                        + gm * Kp * Np * wp.dtype.itemsize
                        + Mp * Np * jnp.dtype(out_dtype).itemsize),
    )

    if gk == 1:
        grid_spec = pl.GridSpec(
            grid=(gm, gn),
            in_specs=[
                pl.BlockSpec((tm, Kp), lambda i, j: (i, 0)),   # activations
                pl.BlockSpec((Kp, tn), lambda i, j: (0, j)),   # weight (K, O)
            ],
            out_specs=pl.BlockSpec((tm, tn), lambda i, j: (i, j)),
        )
        kernel = _linear_kernel
        semantics = ("parallel", "parallel")
    else:
        grid_spec = pl.GridSpec(
            grid=(gm, gn, gk),
            in_specs=[
                pl.BlockSpec((tm, tk), lambda i, j, k: (i, k)),
                pl.BlockSpec((tk, tn), lambda i, j, k: (k, j)),
            ],
            out_specs=pl.BlockSpec((tm, tn), lambda i, j, k: (i, j)),
            scratch_shapes=[pltpu.VMEM((tm, tn), jnp.float32)],
        )
        kernel = _linear_kernel_acc
        semantics = ("parallel", "parallel", "arbitrary")

    out = pl.pallas_call(
        kernel,
        out_shape=jax.ShapeDtypeStruct((Mp, Np), out_dtype),
        grid_spec=grid_spec,
        compiler_params=pltpu.CompilerParams(
            dimension_semantics=semantics,
            vmem_limit_bytes=vmem_limit,
        ),
        cost_estimate=cost,
    )(x2, wp)

    if (Mp, Np) != (B, O):
        out = out[:B, :O]
    return out


if __name__ == "__main__":
    key = jax.random.PRNGKey(0)
    kx, kw = jax.random.split(key)

    # Classifier(input_channel=256, channels=..., output_channel=128)
    B, C, H, W = 8, 4, 8, 8
    K = C * H * W            # 256
    O = 128

    x = jax.random.normal(kx, (B, C, H, W), dtype=jnp.float32)
    # Deterministic Linear weight init (Kaiming-uniform-ish bound like PyTorch).
    bound = 1.0 / (K ** 0.5)
    w = jax.random.uniform(kw, (O, K), dtype=jnp.float32, minval=-bound, maxval=bound)

    wp, cfg = prepare_weight(w)              # one-time, at "parameter load"
    out = classifier_forward(x, wp, cfg)
    jax.block_until_ready(out)

    assert out.shape == (B, O)
    # Same-precision reference (bf16 operands, f32 accumulation) - tight check.
    ref_bf16 = jnp.dot(x.reshape(B, -1).astype(jnp.bfloat16),
                       w.T.astype(jnp.bfloat16),
                       preferred_element_type=jnp.float32).astype(out.dtype)
    assert jnp.allclose(out, ref_bf16, atol=2e-3, rtol=2e-3)
    # Full-precision reference - only bf16 operand rounding differs.
    ref_f32 = x.reshape(B, -1) @ w.T
    assert jnp.allclose(out, ref_f32, atol=5e-2, rtol=5e-2)

    print("KERNEL_OK")
</pallas_src>

<mosaic_0001>
module attributes {stable_mosaic.version = 11 : i64} {
  func.func @_linear_kernel(%arg0: i32, %arg1: i32, %arg2: memref<8x256xf32, #tpu.memory_space<vmem>>, %arg3: memref<256x128xbf16, #tpu.memory_space<vmem>>, %arg4: memref<8x128xf32, #tpu.memory_space<vmem>>) attributes {dimension_semantics = [#tpu.dimension_semantics<parallel>, #tpu.dimension_semantics<parallel>], iteration_bounds = array<i64: 1, 1>, scalar_prefetch = 0 : i64, scratch_operands = 0 : i64, tpu.core_type = #tpu.core_type<tc>, window_params = [{transform_indices = @transform_0, window_bounds = array<i64: 8, 256>}, {transform_indices = @transform_1, window_bounds = array<i64: 256, 128>}, {transform_indices = @transform_2, window_bounds = array<i64: 8, 128>}]} {
    %c0 = arith.constant 0 : index
    %c0_0 = arith.constant 0 : index
    %0 = vector.load %arg2[%c0, %c0_0] : memref<8x256xf32, #tpu.memory_space<vmem>>, vector<8x256xf32>
    %1 = arith.truncf %0 : vector<8x256xf32> to vector<8x256xbf16>
    %c0_1 = arith.constant 0 : index
    %c0_2 = arith.constant 0 : index
    %2 = vector.load %arg3[%c0_1, %c0_2] : memref<256x128xbf16, #tpu.memory_space<vmem>>, vector<256x128xbf16>
    %cst = arith.constant dense<0.000000e+00> : vector<8x128xf32>
    %3 = tpu.matmul %1, %2, %cst {dimension_numbers = #tpu.dot_dimension_numbers<[1], [0], [0], [1], [0, 0, 1, 1], [], []>} : vector<8x256xbf16>, vector<256x128xbf16>, vector<8x128xf32> -> vector<8x128xf32>
    %c0_3 = arith.constant 0 : index
    %c0_4 = arith.constant 0 : index
    %4 = vector.load %arg4[%c0_3, %c0_4] : memref<8x128xf32, #tpu.memory_space<vmem>>, vector<8x128xf32>
    tpu.vector_store %arg4[%c0_3, %c0_4], %3 {strides = array<i32>} : memref<8x128xf32, #tpu.memory_space<vmem>>, vector<8x128xf32>,
    return
  }
  func.func @transform_0(%arg0: i32, %arg1: i32) -> (i32, i32) {
    %c0_i32 = arith.constant 0 : i32
    %c0_i32_0 = arith.constant 0 : i32
    return %arg0, %c0_i32 : i32, i32
  }
  func.func @transform_1(%arg0: i32, %arg1: i32) -> (i32, i32) {
    %c0_i32 = arith.constant 0 : i32
    %c0_i32_0 = arith.constant 0 : i32
    return %c0_i32, %arg1 : i32, i32
  }
  func.func @transform_2(%arg0: i32, %arg1: i32) -> (i32, i32) {
    %c0_i32 = arith.constant 0 : i32
    return %arg0, %arg1 : i32, i32
  }
}

</mosaic_0001>

<llo_original>
// kernel: tpu_custom_call.1
$region0: #{tpu_custom_call.1}
  #allocation0 [shape = 'u32[]', space=smem, size = 0x4, offset = 0x4, fixed_abs, tag = 'smem constant byte address 0x4 - core index']
  #allocation1 [shape = 'u32[72,128]{1,0:T(1,128)}', space=vmem, size = 0x9000, scoped, tag = 'internal scratch']
  %s0 = inlined_call_operand.hbm [shape: f32[8,256], index: 0, kind: input, shape index: {}]
  %s1 = inlined_call_operand.hbm [shape: bf16[256,128], index: 1, kind: input, shape index: {}]
  %s2 = inlined_call_operand.hbm [shape: f32[8,128], index: 2, kind: output, shape index: {}]
  %s3 = sld [smem:[#allocation0]]
  $region26: #{tpu_custom_call.1} parent=0
    _
  %s5 = ssub.s32 1, %s3
  %s6 = scalar_select 0, %s5, %s3
  $region1: #{tpu_custom_call.1} parent=0
    #allocation2 [shape = 'u8[8192]{0}', space=vmem, size = 0x2000, scoped, tag = 'input window, operand 0, single buffered']
    #allocation3 [shape = 's32[1]{0}', space=sflag, size = 0x4, scoped, tag = 'scoped memory for tpu_custom_call.1']
    #allocation4 [shape = 's32[1]{0}', space=sflag, size = 0x4, scoped, tag = 'scoped memory for tpu_custom_call.1']
    #allocation5 [shape = 'u8[65536]{0}', space=vmem, size = 0x10000, scoped, tag = 'input window, operand 1, single buffered']
    #allocation6 [shape = 's32[1]{0}', space=sflag, size = 0x4, scoped, tag = 'scoped memory for tpu_custom_call.1']
    #allocation7 [shape = 'u8[4096]{0}', space=vmem, size = 0x1000, scoped, tag = 'output window, operand 0, single buffered']
    %7 = vsyncpa [#allocation3], 0
    %8 = vsyncpa [#allocation6], 0
    %9 = vsyncpa [#allocation4], 0
    // Predicated region
    $region2: #{tpu_custom_call.1} parent=1 // pred_check
      _
    $region3: #{tpu_custom_call.1} parent=1 // pred_check_branch
      %11 = sbr.rel (0) target = $region5
    $region4: #{tpu_custom_call.1} parent=1 // pred_region
      %13 = vsyncadd [#allocation3], 0
      %s15 = sshll.u32 %s0, 4
      %s16 = int_to_ptr.hbm [resolvable:$true] %s15
      %s17 = sshll.u32 [#allocation2], 4
      %s18 = int_to_ptr.vmem [resolvable:$true] %s17
      %20 = dma.hbm_to_vmem [thread:$0]  %s16, 256, %s18, [#allocation3]
    $region5: #{tpu_custom_call.1} parent=1 // pred_fallthru
      _
    // Predicated region
    $region6: #{tpu_custom_call.1} parent=1 // pred_check
      _
    $region7: #{tpu_custom_call.1} parent=1 // pred_check_branch
      %22 = sbr.rel (0) target = $region9
    $region8: #{tpu_custom_call.1} parent=1 // pred_region
      %24 = vsyncadd [#allocation6], 0
      %s25 = sshll.u32 %s1, 4
      %s26 = int_to_ptr.hbm [resolvable:$true] %s25
      %s27 = sshll.u32 [#allocation5], 4
      %s28 = int_to_ptr.vmem [resolvable:$true] %s27
      %33 = dma.hbm_to_vmem [thread:$0]  %s26, 2048, %s28, [#allocation6], 64, 64, 4
    $region9: #{tpu_custom_call.1} parent=1 // pred_fallthru
      _
    // Predicated region
    $region10: #{tpu_custom_call.1} parent=1 // pred_check
      _
    $region11: #{tpu_custom_call.1} parent=1 // pred_check_branch
      %35 = sbr.rel (0) target = $region13
    $region12: #{tpu_custom_call.1} parent=1 // pred_region
      %37 = dma.done [#allocation3], 256
    $region13: #{tpu_custom_call.1} parent=1 // pred_fallthru
      _
    // Predicated region
    $region14: #{tpu_custom_call.1} parent=1 // pred_check
      _
    $region15: #{tpu_custom_call.1} parent=1 // pred_check_branch
      %39 = sbr.rel (0) target = $region17
    $region16: #{tpu_custom_call.1} parent=1 // pred_region
      %41 = dma.done [#allocation6], 2048
    $region17: #{tpu_custom_call.1} parent=1 // pred_fallthru
      _
    %v42 = vld [vmem:[#allocation2] sm:$0xff]
    %v43 = vld [vmem:[#allocation2 + $0x8] sm:$0xff]
    %v44 = vpack.c.bf16 %v42, %v42
    %v45 = vpack.c.bf16 %v43, %v43
    %v46 = vld [vmem:[#allocation5] sm:$0xf]
    %v47 = vld [vmem:[#allocation5 + $0x4] sm:$0xf]
    %v48 = vld [vmem:[#allocation5 + $0x8] sm:$0xf]
    %v49 = vld [vmem:[#allocation5 + $0xc] sm:$0xf]
    %v50 = vld [vmem:[#allocation5 + $0x10] sm:$0xf]
    %v51 = vld [vmem:[#allocation5 + $0x14] sm:$0xf]
    %v52 = vld [vmem:[#allocation5 + $0x18] sm:$0xf]
    %v53 = vld [vmem:[#allocation5 + $0x1c] sm:$0xf]
    %v54 = vld [vmem:[#allocation5 + $0x20] sm:$0xf]
    %v55 = vld [vmem:[#allocation5 + $0x24] sm:$0xf]
    %v56 = vld [vmem:[#allocation5 + $0x28] sm:$0xf]
    %v57 = vld [vmem:[#allocation5 + $0x2c] sm:$0xf]
    %v58 = vld [vmem:[#allocation5 + $0x30] sm:$0xf]
    %v59 = vld [vmem:[#allocation5 + $0x34] sm:$0xf]
    %v60 = vld [vmem:[#allocation5 + $0x38] sm:$0xf]
    %v61 = vld [vmem:[#allocation5 + $0x3c] sm:$0xf]
    %v62 = vld [vmem:[#allocation5 + $0x40] sm:$0xf]
    %v63 = vld [vmem:[#allocation5 + $0x44] sm:$0xf]
    %v64 = vld [vmem:[#allocation5 + $0x48] sm:$0xf]
    %v65 = vld [vmem:[#allocation5 + $0x4c] sm:$0xf]
    %v66 = vld [vmem:[#allocation5 + $0x50] sm:$0xf]
    %v67 = vld [vmem:[#allocation5 + $0x54] sm:$0xf]
    %v68 = vld [vmem:[#allocation5 + $0x58] sm:$0xf]
    %v69 = vld [vmem:[#allocation5 + $0x5c] sm:$0xf]
    %v70 = vld [vmem:[#allocation5 + $0x60] sm:$0xf]
    %v71 = vld [vmem:[#allocation5 + $0x64] sm:$0xf]
    %v72 = vld [vmem:[#allocation5 + $0x68] sm:$0xf]
    %v73 = vld [vmem:[#allocation5 + $0x6c] sm:$0xf]
    %v74 = vld [vmem:[#allocation5 + $0x70] sm:$0xf]
    %v75 = vld [vmem:[#allocation5 + $0x74] sm:$0xf]
    %v76 = vld [vmem:[#allocation5 + $0x78] sm:$0xf]
    %v77 = vld [vmem:[#allocation5 + $0x7c] sm:$0xf]
    %v110 = vunpack.c.l.b16 %v46
    %v111 = vunpack.c.l.b16 %v47
    %v112 = vunpack.c.l.b16 %v48
    %v113 = vunpack.c.l.b16 %v49
    %v114 = vunpack.c.l.b16 %v50
    %v115 = vunpack.c.l.b16 %v51
    %v116 = vunpack.c.l.b16 %v52
    %v117 = vunpack.c.l.b16 %v53
    %v118 = vunpack.c.l.b16 %v54
    %v119 = vunpack.c.l.b16 %v55
    %v120 = vunpack.c.l.b16 %v56
    %v121 = vunpack.c.l.b16 %v57
    %v122 = vunpack.c.l.b16 %v58
    %v123 = vunpack.c.l.b16 %v59
    %v124 = vunpack.c.l.b16 %v60
    %v125 = vunpack.c.l.b16 %v61
    %v126 = vunpack.c.l.b16 %v62
    %v127 = vunpack.c.l.b16 %v63
    %v128 = vunpack.c.l.b16 %v64
    %v129 = vunpack.c.l.b16 %v65
    %v130 = vunpack.c.l.b16 %v66
    %v131 = vunpack.c.l.b16 %v67
    %v132 = vunpack.c.l.b16 %v68
    %v133 = vunpack.c.l.b16 %v69
    %v134 = vunpack.c.l.b16 %v70
    %v135 = vunpack.c.l.b16 %v71
    %v136 = vunpack.c.l.b16 %v72
    %v137 = vunpack.c.l.b16 %v73
    %v138 = vunpack.c.l.b16 %v74
    %v139 = vunpack.c.l.b16 %v75
    %v140 = vunpack.c.l.b16 %v76
    %v141 = vunpack.c.l.b16 %v77
    %v142 = vpack.c.b16 %v111, %v110
    %v143 = vpack.c.b16 %v113, %v112
    %v144 = vpack.c.b16 %v115, %v114
    %v145 = vpack.c.b16 %v117, %v116
    %v146 = vpack.c.b16 %v119, %v118
    %v147 = vpack.c.b16 %v121, %v120
    %v148 = vpack.c.b16 %v123, %v122
    %v149 = vpack.c.b16 %v125, %v124
    %v150 = vpack.c.b16 %v127, %v126
    %v151 = vpack.c.b16 %v129, %v128
    %v152 = vpack.c.b16 %v131, %v130
    %v153 = vpack.c.b16 %v133, %v132
    %v154 = vpack.c.b16 %v135, %v134
    %v155 = vpack.c.b16 %v137, %v136
    %v156 = vpack.c.b16 %v139, %v138
    %v157 = vpack.c.b16 %v141, %v140
    %174 = vmatpush.bf16.msra.mxu0 %v149
    %175 = vmatpush.bf16.msra.mxu0 %v148
    %176 = vmatpush.bf16.msra.mxu0 %v147
    %177 = vmatpush.bf16.msra.mxu0 %v146
    %178 = vmatpush.bf16.msra.mxu0 %v145
    %179 = vmatpush.bf16.msra.mxu0 %v144
    %180 = vmatpush.bf16.msra.mxu0 %v143
    %181 = vmatpush.bf16.msra.mxu0 %v142
    %182 = vmatmul.bf16.gmra.mxu0 %v44
    %v183 = vpop.f32.mrf.mxu0
    %v184 = vadd.f32 0.0, %v183
    %v185 = vpop.f32.mrf.mxu0
    %186 = vdwg.mxu0
    %187 = vmatpush.bf16.msra.mxu0 %v157
    %188 = vmatpush.bf16.msra.mxu0 %v156
    %189 = vmatpush.bf16.msra.mxu0 %v155
    %190 = vmatpush.bf16.msra.mxu0 %v154
    %191 = vmatpush.bf16.msra.mxu0 %v153
    %192 = vmatpush.bf16.msra.mxu0 %v152
    %193 = vmatpush.bf16.msra.mxu0 %v151
    %194 = vmatpush.bf16.msra.mxu0 %v150
    %195 = vmatmul.bf16.gmra.mxu0 %v45
    %v196 = vpop.f32.mrf.mxu0
    %v197 = vadd.f32 %v184, %v196
    %v198 = vpop.f32.mrf.mxu0
    %199 = vdwg.mxu0
    %200 = vst [vmem:[#allocation7] sm:$0xff] %v197
    // Predicated region
    $region18: #{tpu_custom_call.1} parent=1 // pred_check
      _
    $region19: #{tpu_custom_call.1} parent=1 // pred_check_branch
      %202 = sbr.rel (0) target = $region21
    $region20: #{tpu_custom_call.1} parent=1 // pred_region
      %204 = vsyncadd [#allocation4], 0
      %s206 = sshll.u32 [#allocation7], 4
      %s207 = int_to_ptr.vmem [resolvable:$true] %s206
      %s208 = sshll.u32 %s2, 4
      %s209 = int_to_ptr.hbm [resolvable:$true] %s208
      %211 = dma.vmem_to_hbm [thread:$0]  %s207, 128, %s209, [#allocation4]
    $region21: #{tpu_custom_call.1} parent=1 // pred_fallthru
      _
    // Predicated region
    $region22: #{tpu_custom_call.1} parent=1 // pred_check
      _
    $region23: #{tpu_custom_call.1} parent=1 // pred_check_branch
      %213 = sbr.rel (0) target = $region25
    $region24: #{tpu_custom_call.1} parent=1 // pred_region
      %215 = dma.done [#allocation4], 128
    $region25: #{tpu_custom_call.1} parent=1 // pred_fallthru
      _
    %216 = vsyncpa [#allocation3], 1
    %217 = vsyncpa [#allocation6], 1
    %218 = vsyncpa [#allocation4], 1

</llo_original>
